<compile_context>
chip_gen: v7x
topology: tpu7x:2x2x1
jax: 0.10.0
libtpu: 0.0.40
codegen_flags: <defaults>
</compile_context>

<pallas_src>
import functools

import jax
import jax.numpy as jnp
from jax import lax
from jax.experimental import pallas as pl
from jax.experimental.pallas import tpu as pltpu


# ---------------------------------------------------------------------------
# Kernels
# ---------------------------------------------------------------------------

def _fused_kernel(x_ref, wbd_ref, o_ref):
    # One MXU contraction performs: embedding lookup (one-hot @ table), the
    # position Linear (+ bias folded onto the one-hot rows) and the concat.
    o_ref[...] = jnp.dot(x_ref[...], wbd_ref[...],
                         preferred_element_type=jnp.float32)


def _exact_kernel(x_ref, w_nt_ref, w_np_ref, b_ref, o_ref, *, nt_m, np_m):
    # Faithful to PyTorch for arbitrary (non-one-hot) X_nt:
    # idx = trunc(X_nt @ arange), gather (as one-hot @ table), Linear, concat.
    x_nt = x_ref[:, :nt_m]                        # static ref-view slices (free)
    x_np = x_ref[:, nt_m:nt_m + np_m]
    tile_n = x_nt.shape[0]

    ar = lax.broadcasted_iota(jnp.float32, (tile_n, nt_m), 1)
    idx = jnp.sum(x_nt * ar, axis=-1, keepdims=True).astype(jnp.int32)   # trunc
    lane = lax.broadcasted_iota(jnp.int32, (tile_n, nt_m), 1)
    onehot = (lane == idx).astype(jnp.float32)

    h_nt = jnp.dot(onehot, w_nt_ref[...], preferred_element_type=jnp.float32)
    h_np = jnp.dot(x_np, w_np_ref[...],
                   preferred_element_type=jnp.float32) + b_ref[...]
    o_ref[...] = jnp.concatenate([h_nt, h_np], axis=-1)


# ---------------------------------------------------------------------------
# Tiling / weight-prep helpers
# ---------------------------------------------------------------------------

_MAX_TILE = 1024   # folded rows / grid step; >=2 steps for large N (v7x 2-TC sharding)


def _pick_row_tile(n_rows):
    if n_rows <= _MAX_TILE:
        return n_rows            # one full block (block dim == array dim is always legal)
    return _MAX_TILE             # multiple of 8; cdiv grid pads the ragged last block


def _pick_fold(n, f_in, out_w):
    # Fold rows so the output (and ideally the contraction dim) becomes lane-dense.
    if min(f_in, out_w) >= 128:
        return 1
    for fold in (8, 4, 2):
        if n % fold == 0 and fold * fold * f_in * out_w * 4 <= (4 << 20):
            return fold
    return 1


def _build_block_diag(w_nt, w_np, b_np, fold, nt_m, np_m, emb_dim):
    """fold copies of [[W_nt, b-fold], [0, W_np]] along the diagonal."""
    f_in, out_w = nt_m + np_m, 2 * emb_dim
    wbd = jnp.zeros((fold * f_in, fold * out_w), jnp.float32)
    for c in range(fold):
        r0, c0 = c * f_in, c * out_w
        wbd = wbd.at[r0:r0 + nt_m, c0:c0 + emb_dim].set(w_nt)
        wbd = wbd.at[r0 + nt_m:r0 + f_in, c0 + emb_dim:c0 + out_w].set(w_np)
        # bias folded onto the one-hot rows: each one-hot row sums to exactly 1
        wbd = wbd.at[r0:r0 + nt_m, c0 + emb_dim:c0 + out_w].add(b_np[None, :])
    return wbd


# ---------------------------------------------------------------------------
# Forward
# ---------------------------------------------------------------------------

def atom_encoder_forward(x, w_nt, w_np, b_np, *, nt_m, np_m, assume_one_hot=True):
    """x: (N, nt_m+np_m). w_nt: (nt_m, E). w_np: (np_m, E) (= torch W.T). b_np: (E,)."""
    n, f_in = x.shape
    emb_dim = w_nt.shape[1]
    out_w = 2 * emb_dim
    assert f_in == nt_m + np_m

    x = x.astype(jnp.float32)
    w_nt = w_nt.astype(jnp.float32)
    w_np = w_np.astype(jnp.float32)
    b_np = b_np.astype(jnp.float32)

    if not assume_one_hot:
        return _exact_forward(x, w_nt, w_np, b_np, nt_m=nt_m, np_m=np_m)

    # ---- fast path: single block-diagonal matmul, lane-dense via row folding ----
    fold = _pick_fold(n, f_in, out_w)
    nf = n // fold
    xf = x.reshape(nf, fold * f_in)                      # row-major merge: no copy
    wbd = _build_block_diag(w_nt, w_np, b_np, fold, nt_m, np_m, emb_dim)

    tile_n = _pick_row_tile(nf)
    grid = (pl.cdiv(nf, tile_n),)
    cost = pl.CostEstimate(
        flops=2 * nf * (fold * f_in) * (fold * out_w),
        transcendentals=0,
        bytes_accessed=4 * (nf * fold * f_in + fold * f_in * fold * out_w
                            + nf * fold * out_w))

    out = pl.pallas_call(
        _fused_kernel,
        out_shape=jax.ShapeDtypeStruct((nf, fold * out_w), jnp.float32),
        grid=grid,
        in_specs=[
            pl.BlockSpec((tile_n, fold * f_in), lambda i: (i, 0)),
            pl.BlockSpec((fold * f_in, fold * out_w), lambda i: (0, 0)),  # resident
        ],
        out_specs=pl.BlockSpec((tile_n, fold * out_w), lambda i: (i, 0)),
        compiler_params=pltpu.CompilerParams(
            dimension_semantics=("parallel",)),
        cost_estimate=cost,
    )(xf, wbd)
    return out.reshape(n, out_w)


def _exact_forward(x, w_nt, w_np, b_np, *, nt_m, np_m):
    n, f_in = x.shape
    emb_dim = w_nt.shape[1]
    out_w = 2 * emb_dim
    tile_n = _pick_row_tile(n)
    grid = (pl.cdiv(n, tile_n),)

    kernel = functools.partial(_exact_kernel, nt_m=nt_m, np_m=np_m)
    return pl.pallas_call(
        kernel,
        out_shape=jax.ShapeDtypeStruct((n, out_w), jnp.float32),
        grid=grid,
        in_specs=[
            pl.BlockSpec((tile_n, f_in), lambda i: (i, 0)),
            pl.BlockSpec((nt_m, emb_dim), lambda i: (0, 0)),
            pl.BlockSpec((np_m, emb_dim), lambda i: (0, 0)),
            pl.BlockSpec((1, emb_dim), lambda i: (0, 0)),
        ],
        out_specs=pl.BlockSpec((tile_n, out_w), lambda i: (i, 0)),
        compiler_params=pltpu.CompilerParams(
            dimension_semantics=("parallel",)),
    )(x, w_nt, w_np, b_np.reshape(1, emb_dim))


# ---------------------------------------------------------------------------
# Module-style wrapper + pure-JAX reference
# ---------------------------------------------------------------------------

class AtomEncoderWithPositionPallas:
    def __init__(self, nt_m, np_m, emb_dim, key):
        self.nt_m, self.np_m, self.emb_dim = nt_m, np_m, emb_dim
        k1, k2, k3 = jax.random.split(key, 3)
        lim = (6.0 / (nt_m + emb_dim)) ** 0.5            # xavier_uniform_
        self.w_nt = jax.random.uniform(k1, (nt_m, emb_dim), jnp.float32, -lim, lim)
        bnd = 1.0 / (np_m ** 0.5)                        # nn.Linear default init
        # stored already transposed w.r.t. torch's (emb_dim, np_m) layout
        self.w_np = jax.random.uniform(k2, (np_m, emb_dim), jnp.float32, -bnd, bnd)
        self.b_np = jax.random.uniform(k3, (emb_dim,), jnp.float32, -bnd, bnd)

    def __call__(self, X, assume_one_hot=True):
        return atom_encoder_forward(X, self.w_nt, self.w_np, self.b_np,
                                    nt_m=self.nt_m, np_m=self.np_m,
                                    assume_one_hot=assume_one_hot)


def atom_encoder_reference(X, w_nt, w_np, b_np, nt_m, np_m):
    X_nt = X[:, :nt_m]
    X_np = X[:, nt_m:nt_m + np_m]
    idx = (X_nt @ jnp.arange(nt_m, dtype=jnp.float32)).astype(jnp.int32)
    h_nt = w_nt[idx]
    h_np = X_np @ w_np + b_np
    return jnp.concatenate([h_nt, h_np], axis=-1)


# ---------------------------------------------------------------------------
# Demo
# ---------------------------------------------------------------------------

if __name__ == "__main__":
    key = jax.random.PRNGKey(0)
    N, nt_m, np_m, emb_dim = 16, 8, 8, 32

    k_type, k_pos, k_mod = jax.random.split(key, 3)
    types = jax.random.randint(k_type, (N,), 0, nt_m)
    x_nt = jax.nn.one_hot(types, nt_m, dtype=jnp.float32)
    x_np = jax.random.normal(k_pos, (N, np_m), dtype=jnp.float32)
    X = jnp.concatenate([x_nt, x_np], axis=-1)           # (N, nt_m + np_m)

    model = AtomEncoderWithPositionPallas(nt_m, np_m, emb_dim, k_mod)

    # Fast fused path (block-diagonal weight, one matmul, lane-dense output).
    fwd_fast = jax.jit(functools.partial(atom_encoder_forward,
                                         nt_m=nt_m, np_m=np_m,
                                         assume_one_hot=True))
    h_fast = jax.block_until_ready(fwd_fast(X, model.w_nt, model.w_np, model.b_np))

    # Exact trunc-index + gather path (PyTorch semantics for non-one-hot X_nt).
    fwd_exact = jax.jit(functools.partial(atom_encoder_forward,
                                          nt_m=nt_m, np_m=np_m,
                                          assume_one_hot=False))
    h_exact = jax.block_until_ready(fwd_exact(X, model.w_nt, model.w_np, model.b_np))

    h_ref = atom_encoder_reference(X, model.w_nt, model.w_np, model.b_np, nt_m, np_m)
    assert h_fast.shape == (N, 2 * emb_dim)
    assert jnp.allclose(h_fast, h_ref, atol=1e-3, rtol=1e-3), "fast path mismatch"
    assert jnp.allclose(h_exact, h_ref, atol=1e-3, rtol=1e-3), "exact path mismatch"
    print("KERNEL_OK")
</pallas_src>

<mosaic_0001>
module attributes {stable_mosaic.version = 11 : i64} {
  func.func @_fused_kernel(%arg0: i32, %arg1: memref<2x128xf32, #tpu.memory_space<vmem>>, %arg2: memref<128x512xf32, #tpu.memory_space<vmem>>, %arg3: memref<2x512xf32, #tpu.memory_space<vmem>>) attributes {dimension_semantics = [#tpu.dimension_semantics<parallel>], iteration_bounds = array<i64: 1>, scalar_prefetch = 0 : i64, scratch_operands = 0 : i64, tpu.core_type = #tpu.core_type<tc>, window_params = [{transform_indices = @transform_0, window_bounds = array<i64: 2, 128>}, {pipeline_mode = #tpu.pipeline_mode<synchronous>, transform_indices = @transform_1, window_bounds = array<i64: 128, 512>}, {transform_indices = @transform_2, window_bounds = array<i64: 2, 512>}]} {
    %c0 = arith.constant 0 : index
    %c0_0 = arith.constant 0 : index
    %0 = vector.load %arg1[%c0, %c0_0] : memref<2x128xf32, #tpu.memory_space<vmem>>, vector<2x128xf32>
    %c0_1 = arith.constant 0 : index
    %c0_2 = arith.constant 0 : index
    %1 = vector.load %arg2[%c0_1, %c0_2] : memref<128x512xf32, #tpu.memory_space<vmem>>, vector<128x512xf32>
    %cst = arith.constant dense<0.000000e+00> : vector<2x512xf32>
    %2 = tpu.matmul %0, %1, %cst {dimension_numbers = #tpu.dot_dimension_numbers<[1], [0], [0], [1], [0, 0, 1, 1], [], []>} : vector<2x128xf32>, vector<128x512xf32>, vector<2x512xf32> -> vector<2x512xf32>
    %c0_3 = arith.constant 0 : index
    %c0_4 = arith.constant 0 : index
    %3 = vector.load %arg3[%c0_3, %c0_4] : memref<2x512xf32, #tpu.memory_space<vmem>>, vector<2x512xf32>
    tpu.vector_store %arg3[%c0_3, %c0_4], %2 {strides = array<i32>} : memref<2x512xf32, #tpu.memory_space<vmem>>, vector<2x512xf32>,
    return
  }
  func.func @transform_0(%arg0: i32) -> (i32, i32) {
    %c0_i32 = arith.constant 0 : i32
    %c0_i32_0 = arith.constant 0 : i32
    return %arg0, %c0_i32 : i32, i32
  }
  func.func @transform_1(%arg0: i32) -> (i32, i32) {
    %c0_i32 = arith.constant 0 : i32
    %c0_i32_0 = arith.constant 0 : i32
    %c0_i32_1 = arith.constant 0 : i32
    return %c0_i32, %c0_i32_0 : i32, i32
  }
  func.func @transform_2(%arg0: i32) -> (i32, i32) {
    %c0_i32 = arith.constant 0 : i32
    %c0_i32_0 = arith.constant 0 : i32
    return %arg0, %c0_i32 : i32, i32
  }
}

</mosaic_0001>

<llo_original>
// kernel: atom_encoder_forward.1
$region0: #{atom_encoder_forward.1}
  #allocation0 [shape = 'u32[]', space=smem, size = 0x4, offset = 0x4, fixed_abs, tag = 'smem constant byte address 0x4 - core index']
  #allocation1 [shape = 'u32[144,128]{1,0:T(1,128)}', space=vmem, size = 0x12000, scoped, tag = 'internal scratch']
  %s0 = inlined_call_operand.vmem [shape: f32[2,128], index: 0, kind: input, shape index: {}]
  %s1 = inlined_call_operand.vmem [shape: f32[128,512], index: 1, kind: input, shape index: {}]
  %s2 = inlined_call_operand.vmem [shape: f32[2,512], index: 2, kind: output, shape index: {}]
  %s3 = sld [smem:[#allocation0]]
  $region18: #{atom_encoder_forward.1} parent=0
    _
  %s5 = ssub.s32 1, %s3
  %s6 = scalar_select 0, %s5, %s3
  // Predicated region
  $region2: #{atom_encoder_forward.1} parent=0 // pred_check
    _
  $region3: #{atom_encoder_forward.1} parent=0 // pred_check_branch
    %8 = sbr.rel (0) target = $region5
  $region4: #{atom_encoder_forward.1} parent=0 // pred_region
    _
  $region5: #{atom_encoder_forward.1} parent=0 // pred_fallthru
    _
  // Predicated region
  $region6: #{atom_encoder_forward.1} parent=0 // pred_check
    _
  $region7: #{atom_encoder_forward.1} parent=0 // pred_check_branch
    %10 = sbr.rel (0) target = $region9
  $region8: #{atom_encoder_forward.1} parent=0 // pred_region
    _
  $region9: #{atom_encoder_forward.1} parent=0 // pred_fallthru
    _
  %v11 = vld [vmem:[%s0] sm:$0x3]
  %v12 = vld [vmem:[%s1] sm:$0xff]
  %v13 = vld [vmem:[%s1 + $0x8] sm:$0xff]
  %v14 = vld [vmem:[%s1 + $0x10] sm:$0xff]
  %v15 = vld [vmem:[%s1 + $0x18] sm:$0xff]
  %v16 = vld [vmem:[%s1 + $0x20] sm:$0xff]
  %v17 = vld [vmem:[%s1 + $0x28] sm:$0xff]
  %v18 = vld [vmem:[%s1 + $0x30] sm:$0xff]
  %v19 = vld [vmem:[%s1 + $0x38] sm:$0xff]
  %v20 = vld [vmem:[%s1 + $0x40] sm:$0xff]
  %v21 = vld [vmem:[%s1 + $0x48] sm:$0xff]
  %v22 = vld [vmem:[%s1 + $0x50] sm:$0xff]
  %v23 = vld [vmem:[%s1 + $0x58] sm:$0xff]
  %v24 = vld [vmem:[%s1 + $0x60] sm:$0xff]
  %v25 = vld [vmem:[%s1 + $0x68] sm:$0xff]
  %v26 = vld [vmem:[%s1 + $0x70] sm:$0xff]
  %v27 = vld [vmem:[%s1 + $0x78] sm:$0xff]
  %v28 = vld [vmem:[%s1 + $0x80] sm:$0xff]
  %v29 = vld [vmem:[%s1 + $0x88] sm:$0xff]
  %v30 = vld [vmem:[%s1 + $0x90] sm:$0xff]
  %v31 = vld [vmem:[%s1 + $0x98] sm:$0xff]
  %v32 = vld [vmem:[%s1 + $0xa0] sm:$0xff]
  %v33 = vld [vmem:[%s1 + $0xa8] sm:$0xff]
  %v34 = vld [vmem:[%s1 + $0xb0] sm:$0xff]
  %v35 = vld [vmem:[%s1 + $0xb8] sm:$0xff]
  %v36 = vld [vmem:[%s1 + $0xc0] sm:$0xff]
  %v37 = vld [vmem:[%s1 + $0xc8] sm:$0xff]
  %v38 = vld [vmem:[%s1 + $0xd0] sm:$0xff]
  %v39 = vld [vmem:[%s1 + $0xd8] sm:$0xff]
  %v40 = vld [vmem:[%s1 + $0xe0] sm:$0xff]
  %v41 = vld [vmem:[%s1 + $0xe8] sm:$0xff]
  %v42 = vld [vmem:[%s1 + $0xf0] sm:$0xff]
  %v43 = vld [vmem:[%s1 + $0xf8] sm:$0xff]
  %v44 = vld [vmem:[%s1 + $0x100] sm:$0xff]
  %v45 = vld [vmem:[%s1 + $0x108] sm:$0xff]
  %v46 = vld [vmem:[%s1 + $0x110] sm:$0xff]
  %v47 = vld [vmem:[%s1 + $0x118] sm:$0xff]
  %v48 = vld [vmem:[%s1 + $0x120] sm:$0xff]
  %v49 = vld [vmem:[%s1 + $0x128] sm:$0xff]
  %v50 = vld [vmem:[%s1 + $0x130] sm:$0xff]
  %v51 = vld [vmem:[%s1 + $0x138] sm:$0xff]
  %v52 = vld [vmem:[%s1 + $0x140] sm:$0xff]
  %v53 = vld [vmem:[%s1 + $0x148] sm:$0xff]
  %v54 = vld [vmem:[%s1 + $0x150] sm:$0xff]
  %v55 = vld [vmem:[%s1 + $0x158] sm:$0xff]
  %v56 = vld [vmem:[%s1 + $0x160] sm:$0xff]
  %v57 = vld [vmem:[%s1 + $0x168] sm:$0xff]
  %v58 = vld [vmem:[%s1 + $0x170] sm:$0xff]
  %v59 = vld [vmem:[%s1 + $0x178] sm:$0xff]
  %v60 = vld [vmem:[%s1 + $0x180] sm:$0xff]
  %v61 = vld [vmem:[%s1 + $0x188] sm:$0xff]
  %v62 = vld [vmem:[%s1 + $0x190] sm:$0xff]
  %v63 = vld [vmem:[%s1 + $0x198] sm:$0xff]
  %v64 = vld [vmem:[%s1 + $0x1a0] sm:$0xff]
  %v65 = vld [vmem:[%s1 + $0x1a8] sm:$0xff]
  %v66 = vld [vmem:[%s1 + $0x1b0] sm:$0xff]
  %v67 = vld [vmem:[%s1 + $0x1b8] sm:$0xff]
  %v68 = vld [vmem:[%s1 + $0x1c0] sm:$0xff]
  %v69 = vld [vmem:[%s1 + $0x1c8] sm:$0xff]
  %v70 = vld [vmem:[%s1 + $0x1d0] sm:$0xff]
  %v71 = vld [vmem:[%s1 + $0x1d8] sm:$0xff]
  %v72 = vld [vmem:[%s1 + $0x1e0] sm:$0xff]
  %v73 = vld [vmem:[%s1 + $0x1e8] sm:$0xff]
  %v74 = vld [vmem:[%s1 + $0x1f0] sm:$0xff]
  %v75 = vld [vmem:[%s1 + $0x1f8] sm:$0xff]
  %76 = vmatprep.subr.mxu0 %v13
  %77 = vmatpush1.msra.mxu0 %v12
  %78 = vmatprep.subr.mxu0 %v17
  %79 = vmatpush1.msra.mxu0 %v16
  %80 = vmatprep.subr.mxu0 %v21
  %81 = vmatpush1.msra.mxu0 %v20
  %82 = vmatprep.subr.mxu0 %v25
  %83 = vmatpush1.msra.mxu0 %v24
  %84 = vmatprep.subr.mxu0 %v29
  %85 = vmatpush1.msra.mxu0 %v28
  %86 = vmatprep.subr.mxu0 %v33
  %87 = vmatpush1.msra.mxu0 %v32
  %88 = vmatprep.subr.mxu0 %v37
  %89 = vmatpush1.msra.mxu0 %v36
  %90 = vmatprep.subr.mxu0 %v41
  %91 = vmatpush1.msra.mxu0 %v40
  %92 = vmatprep.subr.mxu0 %v45
  %93 = vmatpush1.msra.mxu0 %v44
  %94 = vmatprep.subr.mxu0 %v49
  %95 = vmatpush1.msra.mxu0 %v48
  %96 = vmatprep.subr.mxu0 %v53
  %97 = vmatpush1.msra.mxu0 %v52
  %98 = vmatprep.subr.mxu0 %v57
  %99 = vmatpush1.msra.mxu0 %v56
  %100 = vmatprep.subr.mxu0 %v61
  %101 = vmatpush1.msra.mxu0 %v60
  %102 = vmatprep.subr.mxu0 %v65
  %103 = vmatpush1.msra.mxu0 %v64
  %104 = vmatprep.subr.mxu0 %v69
  %105 = vmatpush1.msra.mxu0 %v68
  %106 = vmatprep.subr.mxu0 %v73
  %107 = vmatpush1.msra.mxu0 %v72
  %108 = vmatprep.subr.mxu0 0.0
  %109 = vmatpush1.msra.mxu0 0.0
  %110 = vmatprep.subr.mxu0 0.0
  %111 = vmatpush1.msra.mxu0 0.0
  %112 = vmatprep.subr.mxu0 0.0
  %113 = vmatpush1.msra.mxu0 0.0
  %114 = vmatprep.subr.mxu0 0.0
  %115 = vmatpush1.msra.mxu0 0.0
  %116 = vmatprep.subr.mxu0 0.0
  %117 = vmatpush1.msra.mxu0 0.0
  %118 = vmatprep.subr.mxu0 0.0
  %119 = vmatpush1.msra.mxu0 0.0
  %120 = vmatprep.subr.mxu0 0.0
  %121 = vmatpush1.msra.mxu0 0.0
  %122 = vmatprep.subr.mxu0 0.0
  %123 = vmatpush1.msra.mxu0 0.0
  %124 = vmatprep.subr.mxu0 0.0
  %125 = vmatpush1.msra.mxu0 0.0
  %126 = vmatprep.subr.mxu0 0.0
  %127 = vmatpush1.msra.mxu0 0.0
  %128 = vmatprep.subr.mxu0 0.0
  %129 = vmatpush1.msra.mxu0 0.0
  %130 = vmatprep.subr.mxu0 0.0
  %131 = vmatpush1.msra.mxu0 0.0
  %132 = vmatprep.subr.mxu0 0.0
  %133 = vmatpush1.msra.mxu0 0.0
  %134 = vmatprep.subr.mxu0 0.0
  %135 = vmatpush1.msra.mxu0 0.0
  %136 = vmatprep.subr.mxu0 0.0
  %137 = vmatpush1.msra.mxu0 0.0
  %138 = vmatprep.subr.mxu0 0.0
  %139 = vmatpush1.msra.mxu0 0.0
  %140 = vmatprep.mubr.f32.mxu0 0.0
  %141 = vmatmul.mubr.f32.gmra.mrb[0].mxu0 %v11
  %v142 = vpop.f32.mrb[0].mxu0
  %v143 = vadd.f32 0.0, %v142
  %v144 = vpop.f32.mrb[0].mxu0
  %v145 = vadd.f32 0.0, %v144
  %146 = vdwg.mxu0
  %147 = vmatprep.subr.mxu0 %v15
  %148 = vmatpush1.msra.mxu0 %v14
  %149 = vmatprep.subr.mxu0 %v19
  %150 = vmatpush1.msra.mxu0 %v18
  %151 = vmatprep.subr.mxu0 %v23
  %152 = vmatpush1.msra.mxu0 %v22
  %153 = vmatprep.subr.mxu0 %v27
  %154 = vmatpush1.msra.mxu0 %v26
  %155 = vmatprep.subr.mxu0 %v31
  %156 = vmatpush1.msra.mxu0 %v30
  %157 = vmatprep.subr.mxu0 %v35
  %158 = vmatpush1.msra.mxu0 %v34
  %159 = vmatprep.subr.mxu0 %v39
  %160 = vmatpush1.msra.mxu0 %v38
  %161 = vmatprep.subr.mxu0 %v43
  %162 = vmatpush1.msra.mxu0 %v42
  %163 = vmatprep.subr.mxu0 %v47
  %164 = vmatpush1.msra.mxu0 %v46
  %165 = vmatprep.subr.mxu0 %v51
  %166 = vmatpush1.msra.mxu0 %v50
  %167 = vmatprep.subr.mxu0 %v55
  %168 = vmatpush1.msra.mxu0 %v54
  %169 = vmatprep.subr.mxu0 %v59
  %170 = vmatpush1.msra.mxu0 %v58
  %171 = vmatprep.subr.mxu0 %v63
  %172 = vmatpush1.msra.mxu0 %v62
  %173 = vmatprep.subr.mxu0 %v67
  %174 = vmatpush1.msra.mxu0 %v66
  %175 = vmatprep.subr.mxu0 %v71
  %176 = vmatpush1.msra.mxu0 %v70
  %177 = vmatprep.subr.mxu0 %v75
  %178 = vmatpush1.msra.mxu0 %v74
  %179 = vmatprep.subr.mxu0 0.0
  %180 = vmatpush1.msra.mxu0 0.0
  %181 = vmatprep.subr.mxu0 0.0
  %182 = vmatpush1.msra.mxu0 0.0
  %183 = vmatprep.subr.mxu0 0.0
  %184 = vmatpush1.msra.mxu0 0.0
  %185 = vmatprep.subr.mxu0 0.0
  %186 = vmatpush1.msra.mxu0 0.0
  %187 = vmatprep.subr.mxu0 0.0
  %188 = vmatpush1.msra.mxu0 0.0
  %189 = vmatprep.subr.mxu0 0.0
  %190 = vmatpush1.msra.mxu0 0.0
  %191 = vmatprep.subr.mxu0 0.0
  %192 = vmatpush1.msra.mxu0 0.0
  %193 = vmatprep.subr.mxu0 0.0
  %194 = vmatpush1.msra.mxu0 0.0
  %195 = vmatprep.subr.mxu0 0.0
  %196 = vmatpush1.msra.mxu0 0.0
  %197 = vmatprep.subr.mxu0 0.0
  %198 = vmatpush1.msra.mxu0 0.0
  %199 = vmatprep.subr.mxu0 0.0
  %200 = vmatpush1.msra.mxu0 0.0
  %201 = vmatprep.subr.mxu0 0.0
  %202 = vmatpush1.msra.mxu0 0.0
  %203 = vmatprep.subr.mxu0 0.0
  %204 = vmatpush1.msra.mxu0 0.0
  %205 = vmatprep.subr.mxu0 0.0
  %206 = vmatpush1.msra.mxu0 0.0
  %207 = vmatprep.subr.mxu0 0.0
  %208 = vmatpush1.msra.mxu0 0.0
  %209 = vmatprep.subr.mxu0 0.0
  %210 = vmatpush1.msra.mxu0 0.0
  %211 = vmatprep.mubr.f32.mxu0 0.0
  %212 = vmatmul.mubr.f32.gmra.mrb[0].mxu0 %v11
  %v213 = vpop.f32.mrb[0].mxu0
  %v214 = vadd.f32 0.0, %v213
  %v215 = vpop.f32.mrb[0].mxu0
  %v216 = vadd.f32 0.0, %v215
  %217 = vdwg.mxu0
  %v222 = vcombine.low %v143, %v145
  %v223 = vcombine.low %v214, %v216
  %v225 = vunpack.c.l.s4 1983009808
  %v226 = vunpack.c.0.s8 %v225
  %v227 = vlaneseq
  %v228 = vshrl.u32 %v227, 7
  %v229 = vsub.s32 %v226, %v228
  %v230 = vrot.slane %v222, %v229
  %v232 = vunpack.c.l.s4 1983009808
  %v233 = vunpack.c.0.s8 %v232
  %v234 = vlaneseq
  %v235 = vshrl.u32 %v234, 7
  %v236 = vsub.s32 %v233, %v235
  %v237 = vrot.slane %v223, %v236
  %v238 = vcombine.low %v230, %v237
  %240 = vst [vmem:[%s2] sm:$0xff] %v238
  // Predicated region
  $region10: #{atom_encoder_forward.1} parent=0 // pred_check
    _
  $region11: #{atom_encoder_forward.1} parent=0 // pred_check_branch
    %242 = sbr.rel (0) target = $region13
  $region12: #{atom_encoder_forward.1} parent=0 // pred_region
    _
  $region13: #{atom_encoder_forward.1} parent=0 // pred_fallthru
    _
  // Predicated region
  $region14: #{atom_encoder_forward.1} parent=0 // pred_check
    _
  $region15: #{atom_encoder_forward.1} parent=0 // pred_check_branch
    %244 = sbr.rel (0) target = $region17
  $region16: #{atom_encoder_forward.1} parent=0 // pred_region
    _
  $region17: #{atom_encoder_forward.1} parent=0 // pred_fallthru
    _

</llo_original>
